<compile_context>
chip_gen: v7x
topology: tpu7x:2x2x1
jax: 0.10.0
libtpu: 0.0.40
codegen_flags: <defaults>
</compile_context>

<pallas_src>
import functools

import jax
import jax.numpy as jnp
from jax.experimental import pallas as pl
from jax.experimental.pallas import tpu as pltpu

_NEG_LOGIT = -1e30  # bias for padded output lanes: exp() underflows to 0.


def _round_up(n, m):
    return ((n + m - 1) // m) * m


def _mlp_kernel(x_ref,
                w1_ref, b1_ref,
                w2_ref, b2_ref,
                w3_ref, b3_ref,
                out_ref):
    """Fused 3-layer MLP (BN pre-folded) + ReLU + LogSoftmax for one batch tile."""
    x = x_ref[...]  # bf16 tile [TB, Kp]

    # layer1: Linear (BN folded) -> ReLU   (Dropout = identity in eval mode)
    h1 = jnp.dot(x, w1_ref[...], preferred_element_type=jnp.float32) + b1_ref[...]
    h1 = jnp.maximum(h1, 0.0)

    # layer2: Linear (BN folded) -> ReLU
    h2 = jnp.dot(h1.astype(w2_ref.dtype), w2_ref[...],
                 preferred_element_type=jnp.float32) + b2_ref[...]
    h2 = jnp.maximum(h2, 0.0)

    # layer3: Linear -> LogSoftmax(dim=1)
    # Padded logit lanes carry a -1e30 bias -> exp() == 0, no effect on lse.
    logits = jnp.dot(h2.astype(w3_ref.dtype), w3_ref[...],
                     preferred_element_type=jnp.float32) + b3_ref[...]
    m = jnp.max(logits, axis=-1, keepdims=True)
    shifted = logits - m
    lse = jnp.log(jnp.sum(jnp.exp(shifted), axis=-1, keepdims=True))
    out_ref[...] = (shifted - lse).astype(out_ref.dtype)


def _fold_bn_into_linear(params, eps=1e-5):
    """Fold eval-mode BatchNorm1d into the preceding Linear (f32)."""
    s1 = params["g1"] / jnp.sqrt(params["rv1"] + eps)
    t1 = params["beta1"] - params["rm1"] * s1
    s2 = params["g2"] / jnp.sqrt(params["rv2"] + eps)
    t2 = params["beta2"] - params["rm2"] * s2

    w1f = params["w1"] * s1[None, :]
    b1f = params["b1"] * s1 + t1
    w2f = params["w2"] * s2[None, :]
    b2f = params["b2"] * s2 + t2
    return w1f, b1f, w2f, b2f, params["w3"], params["b3"]


@functools.partial(jax.jit, static_argnames=("matmul_dtype", "batch_tile"))
def net_forward(x, params, *, matmul_dtype=jnp.bfloat16, batch_tile=512):
    """params: dict from init_params(). Returns [B, output_dim] log-probs (f32)."""
    B, input_dim = x.shape
    hidden_dim = params["w1"].shape[1]
    output_dim = params["w3"].shape[1]

    w1f, b1f, w2f, b2f, w3f, b3f = _fold_bn_into_linear(params)

    # Lane/sublane-friendly padded shapes.
    Kp = _round_up(input_dim, 128)
    Hp = _round_up(hidden_dim, 128)
    Np = _round_up(output_dim, 128)
    Bp = _round_up(B, 8)
    TB = min(batch_tile, Bp)
    Bp = _round_up(Bp, TB)
    grid = (Bp // TB,)

    wdt = jnp.dtype(matmul_dtype)

    # Zero-pad: padded input cols x padded w1 rows contribute 0; padded hidden
    # cols have zero weights and zero bias -> relu(0)=0 -> no downstream leak.
    xp = jnp.pad(x.astype(jnp.float32), ((0, Bp - B), (0, Kp - input_dim)))
    w1p = jnp.pad(w1f, ((0, Kp - input_dim), (0, Hp - hidden_dim)))
    b1p = jnp.pad(b1f, (0, Hp - hidden_dim))
    w2p = jnp.pad(w2f, ((0, Hp - hidden_dim), (0, Hp - hidden_dim)))
    b2p = jnp.pad(b2f, (0, Hp - hidden_dim))
    w3p = jnp.pad(w3f, ((0, Hp - hidden_dim), (0, Np - output_dim)))
    # Padded logit lanes get a huge negative bias so the softmax ignores them.
    b3p = jnp.pad(b3f, (0, Np - output_dim), constant_values=_NEG_LOGIT)

    row = lambda v: v.reshape(1, -1).astype(jnp.float32)

    operands = (
        xp.astype(wdt),
        w1p.astype(wdt), row(b1p),
        w2p.astype(wdt), row(b2p),
        w3p.astype(wdt), row(b3p),
    )

    const = lambda shape: pl.BlockSpec(shape, lambda i: (0, 0))
    in_specs = [
        pl.BlockSpec((TB, Kp), lambda i: (i, 0)),   # x: tiled over batch
        const((Kp, Hp)), const((1, Hp)),            # weights/bias: VMEM-resident
        const((Hp, Hp)), const((1, Hp)),
        const((Hp, Np)), const((1, Np)),
    ]
    out_specs = pl.BlockSpec((TB, Np), lambda i: (i, 0))

    # VMEM budget: weights + biases + double-buffered x/out tiles + f32 temps.
    bytes_needed = (
        (Kp * Hp + Hp * Hp + Hp * Np) * wdt.itemsize
        + (2 * Hp + Np) * 4
        + 2 * TB * (Kp * wdt.itemsize + Np * 4)
        + 4 * TB * Hp * 4
    )
    vmem_limit = int(min(max(2 * bytes_needed, 16 << 20), 64 << 20))  # v7x cap

    out = pl.pallas_call(
        _mlp_kernel,
        out_shape=jax.ShapeDtypeStruct((Bp, Np), jnp.float32),
        grid=grid,
        in_specs=in_specs,
        out_specs=out_specs,
        compiler_params=pltpu.CompilerParams(
            dimension_semantics=("parallel",),
            vmem_limit_bytes=vmem_limit),
    )(*operands)

    return out[:B, :output_dim]


def init_params(key, input_dim, hidden_dim, output_dim):
    ks = jax.random.split(key, 6)

    def lin(kw, kb, fan_in, fan_out):
        bound = 1.0 / jnp.sqrt(fan_in)
        w = jax.random.uniform(kw, (fan_in, fan_out), jnp.float32, -bound, bound)
        b = jax.random.uniform(kb, (fan_out,), jnp.float32, -bound, bound)
        return w, b

    w1, b1 = lin(ks[0], ks[1], input_dim, hidden_dim)
    w2, b2 = lin(ks[2], ks[3], hidden_dim, hidden_dim)
    w3, b3 = lin(ks[4], ks[5], hidden_dim, output_dim)

    # BatchNorm1d defaults: gamma=1, beta=0, running_mean=0, running_var=1.
    return dict(
        w1=w1, b1=b1,
        g1=jnp.ones((hidden_dim,), jnp.float32),
        beta1=jnp.zeros((hidden_dim,), jnp.float32),
        rm1=jnp.zeros((hidden_dim,), jnp.float32),
        rv1=jnp.ones((hidden_dim,), jnp.float32),
        w2=w2, b2=b2,
        g2=jnp.ones((hidden_dim,), jnp.float32),
        beta2=jnp.zeros((hidden_dim,), jnp.float32),
        rm2=jnp.zeros((hidden_dim,), jnp.float32),
        rv2=jnp.ones((hidden_dim,), jnp.float32),
        w3=w3, b3=b3,
    )


def _reference(x, params):
    """Exact eval-mode PyTorch semantics in f32 (no folding, no bf16)."""
    eps = 1e-5
    h = x @ params["w1"] + params["b1"]
    h = (h - params["rm1"]) / jnp.sqrt(params["rv1"] + eps) * params["g1"] + params["beta1"]
    h = jnp.maximum(h, 0.0)
    h = h @ params["w2"] + params["b2"]
    h = (h - params["rm2"]) / jnp.sqrt(params["rv2"] + eps) * params["g2"] + params["beta2"]
    h = jnp.maximum(h, 0.0)
    logits = h @ params["w3"] + params["b3"]
    return jax.nn.log_softmax(logits, axis=1)


if __name__ == "__main__":
    key = jax.random.PRNGKey(0)
    k_x, k_p = jax.random.split(key)

    B, input_dim, hidden_dim, output_dim = 8, 16, 32, 8
    x = jax.random.normal(k_x, (B, input_dim), jnp.float32)
    params = init_params(k_p, input_dim, hidden_dim, output_dim)

    out = jax.block_until_ready(net_forward(x, params))

    ref_f32 = _reference(x, params)
    assert out.shape == (B, output_dim)
    assert bool(jnp.all(jnp.isfinite(out))), "non-finite output"
    # bf16 matmul operands vs exact f32 reference -> loose tolerance.
    assert jnp.allclose(out, ref_f32, atol=3e-2, rtol=3e-2), "mismatch vs JAX reference"
    # Rows are log-probabilities: each row must sum to ~1 after exp.
    assert jnp.allclose(jnp.exp(out).sum(axis=1), 1.0, atol=1e-3), "log-softmax not normalized"

    print("KERNEL_OK")
</pallas_src>

<mosaic_0001>
module attributes {stable_mosaic.version = 11 : i64} {
  func.func @_mlp_kernel(%arg0: i32, %arg1: memref<8x128xbf16, #tpu.memory_space<vmem>>, %arg2: memref<128x128xbf16, #tpu.memory_space<vmem>>, %arg3: memref<1x128xf32, #tpu.memory_space<vmem>>, %arg4: memref<128x128xbf16, #tpu.memory_space<vmem>>, %arg5: memref<1x128xf32, #tpu.memory_space<vmem>>, %arg6: memref<128x128xbf16, #tpu.memory_space<vmem>>, %arg7: memref<1x128xf32, #tpu.memory_space<vmem>>, %arg8: memref<8x128xf32, #tpu.memory_space<vmem>>) attributes {dimension_semantics = [#tpu.dimension_semantics<parallel>], iteration_bounds = array<i64: 1>, scalar_prefetch = 0 : i64, scratch_operands = 0 : i64, tpu.core_type = #tpu.core_type<tc>, window_params = [{transform_indices = @transform_0, window_bounds = array<i64: 8, 128>}, {pipeline_mode = #tpu.pipeline_mode<synchronous>, transform_indices = @transform_1, window_bounds = array<i64: 128, 128>}, {pipeline_mode = #tpu.pipeline_mode<synchronous>, transform_indices = @transform_2, window_bounds = array<i64: 1, 128>}, {pipeline_mode = #tpu.pipeline_mode<synchronous>, transform_indices = @transform_3, window_bounds = array<i64: 128, 128>}, {pipeline_mode = #tpu.pipeline_mode<synchronous>, transform_indices = @transform_4, window_bounds = array<i64: 1, 128>}, {pipeline_mode = #tpu.pipeline_mode<synchronous>, transform_indices = @transform_5, window_bounds = array<i64: 128, 128>}, {pipeline_mode = #tpu.pipeline_mode<synchronous>, transform_indices = @transform_6, window_bounds = array<i64: 1, 128>}, {transform_indices = @transform_7, window_bounds = array<i64: 8, 128>}]} {
    %c0 = arith.constant 0 : index
    %c0_0 = arith.constant 0 : index
    %0 = vector.load %arg1[%c0, %c0_0] : memref<8x128xbf16, #tpu.memory_space<vmem>>, vector<8x128xbf16>
    %c0_1 = arith.constant 0 : index
    %c0_2 = arith.constant 0 : index
    %1 = vector.load %arg2[%c0_1, %c0_2] : memref<128x128xbf16, #tpu.memory_space<vmem>>, vector<128x128xbf16>
    %cst = arith.constant dense<0.000000e+00> : vector<8x128xf32>
    %2 = tpu.matmul %0, %1, %cst {dimension_numbers = #tpu.dot_dimension_numbers<[1], [0], [0], [1], [0, 0, 1, 1], [], []>} : vector<8x128xbf16>, vector<128x128xbf16>, vector<8x128xf32> -> vector<8x128xf32>
    %c0_3 = arith.constant 0 : index
    %c0_4 = arith.constant 0 : index
    %3 = vector.load %arg3[%c0_3, %c0_4] : memref<1x128xf32, #tpu.memory_space<vmem>>, vector<1x128xf32>
    %4 = vector.broadcast %3 : vector<1x128xf32> to vector<8x128xf32>
    %5 = arith.addf %2, %4 : vector<8x128xf32>
    %cst_5 = arith.constant 0.000000e+00 : f32
    %6 = vector.broadcast %cst_5 : f32 to vector<8x128xf32>
    %7 = arith.maximumf %5, %6 : vector<8x128xf32>
    %8 = arith.truncf %7 : vector<8x128xf32> to vector<8x128xbf16>
    %c0_6 = arith.constant 0 : index
    %c0_7 = arith.constant 0 : index
    %9 = vector.load %arg4[%c0_6, %c0_7] : memref<128x128xbf16, #tpu.memory_space<vmem>>, vector<128x128xbf16>
    %cst_8 = arith.constant dense<0.000000e+00> : vector<8x128xf32>
    %10 = tpu.matmul %8, %9, %cst_8 {dimension_numbers = #tpu.dot_dimension_numbers<[1], [0], [0], [1], [0, 0, 1, 1], [], []>} : vector<8x128xbf16>, vector<128x128xbf16>, vector<8x128xf32> -> vector<8x128xf32>
    %c0_9 = arith.constant 0 : index
    %c0_10 = arith.constant 0 : index
    %11 = vector.load %arg5[%c0_9, %c0_10] : memref<1x128xf32, #tpu.memory_space<vmem>>, vector<1x128xf32>
    %12 = vector.broadcast %11 : vector<1x128xf32> to vector<8x128xf32>
    %13 = arith.addf %10, %12 : vector<8x128xf32>
    %cst_11 = arith.constant 0.000000e+00 : f32
    %14 = vector.broadcast %cst_11 : f32 to vector<8x128xf32>
    %15 = arith.maximumf %13, %14 : vector<8x128xf32>
    %16 = arith.truncf %15 : vector<8x128xf32> to vector<8x128xbf16>
    %c0_12 = arith.constant 0 : index
    %c0_13 = arith.constant 0 : index
    %17 = vector.load %arg6[%c0_12, %c0_13] : memref<128x128xbf16, #tpu.memory_space<vmem>>, vector<128x128xbf16>
    %cst_14 = arith.constant dense<0.000000e+00> : vector<8x128xf32>
    %18 = tpu.matmul %16, %17, %cst_14 {dimension_numbers = #tpu.dot_dimension_numbers<[1], [0], [0], [1], [0, 0, 1, 1], [], []>} : vector<8x128xbf16>, vector<128x128xbf16>, vector<8x128xf32> -> vector<8x128xf32>
    %c0_15 = arith.constant 0 : index
    %c0_16 = arith.constant 0 : index
    %19 = vector.load %arg7[%c0_15, %c0_16] : memref<1x128xf32, #tpu.memory_space<vmem>>, vector<1x128xf32>
    %20 = vector.broadcast %19 : vector<1x128xf32> to vector<8x128xf32>
    %21 = arith.addf %18, %20 : vector<8x128xf32>
    %cst_17 = arith.constant dense<0xFF800000> : vector<8xf32>
    %22 = vector.multi_reduction <maximumf>, %21, %cst_17 [1] : vector<8x128xf32> to vector<8xf32>
    %23 = vector.shape_cast %22 : vector<8xf32> to vector<8x1xf32>
    %24 = vector.broadcast %23 : vector<8x1xf32> to vector<8x128xf32>
    %25 = arith.subf %21, %24 : vector<8x128xf32>
    %26 = math.exp %25 : vector<8x128xf32>
    %cst_18 = arith.constant dense<0.000000e+00> : vector<8xf32>
    %27 = vector.multi_reduction <add>, %26, %cst_18 [1] : vector<8x128xf32> to vector<8xf32>
    %28 = vector.shape_cast %27 : vector<8xf32> to vector<8x1xf32>
    %29 = math.log %28 : vector<8x1xf32>
    %30 = vector.broadcast %29 : vector<8x1xf32> to vector<8x128xf32>
    %31 = arith.subf %25, %30 : vector<8x128xf32>
    %c0_19 = arith.constant 0 : index
    %c0_20 = arith.constant 0 : index
    %32 = vector.load %arg8[%c0_19, %c0_20] : memref<8x128xf32, #tpu.memory_space<vmem>>, vector<8x128xf32>
    tpu.vector_store %arg8[%c0_19, %c0_20], %31 {strides = array<i32>} : memref<8x128xf32, #tpu.memory_space<vmem>>, vector<8x128xf32>,
    return
  }
  func.func @transform_0(%arg0: i32) -> (i32, i32) {
    %c0_i32 = arith.constant 0 : i32
    %c0_i32_0 = arith.constant 0 : i32
    return %arg0, %c0_i32 : i32, i32
  }
  func.func @transform_1(%arg0: i32) -> (i32, i32) {
    %c0_i32 = arith.constant 0 : i32
    %c0_i32_0 = arith.constant 0 : i32
    %c0_i32_1 = arith.constant 0 : i32
    return %c0_i32, %c0_i32_0 : i32, i32
  }
  func.func @transform_2(%arg0: i32) -> (i32, i32) {
    %c0_i32 = arith.constant 0 : i32
    %c0_i32_0 = arith.constant 0 : i32
    %c0_i32_1 = arith.constant 0 : i32
    return %c0_i32, %c0_i32_0 : i32, i32
  }
  func.func @transform_3(%arg0: i32) -> (i32, i32) {
    %c0_i32 = arith.constant 0 : i32
    %c0_i32_0 = arith.constant 0 : i32
    %c0_i32_1 = arith.constant 0 : i32
    return %c0_i32, %c0_i32_0 : i32, i32
  }
  func.func @transform_4(%arg0: i32) -> (i32, i32) {
    %c0_i32 = arith.constant 0 : i32
    %c0_i32_0 = arith.constant 0 : i32
    %c0_i32_1 = arith.constant 0 : i32
    return %c0_i32, %c0_i32_0 : i32, i32
  }
  func.func @transform_5(%arg0: i32) -> (i32, i32) {
    %c0_i32 = arith.constant 0 : i32
    %c0_i32_0 = arith.constant 0 : i32
    %c0_i32_1 = arith.constant 0 : i32
    return %c0_i32, %c0_i32_0 : i32, i32
  }
  func.func @transform_6(%arg0: i32) -> (i32, i32) {
    %c0_i32 = arith.constant 0 : i32
    %c0_i32_0 = arith.constant 0 : i32
    %c0_i32_1 = arith.constant 0 : i32
    return %c0_i32, %c0_i32_0 : i32, i32
  }
  func.func @transform_7(%arg0: i32) -> (i32, i32) {
    %c0_i32 = arith.constant 0 : i32
    %c0_i32_0 = arith.constant 0 : i32
    return %arg0, %c0_i32 : i32, i32
  }
}

</mosaic_0001>

<llo_original>
// kernel: net_forward.1
$region0: #{net_forward.1}
  #allocation0 [shape = 'u32[]', space=smem, size = 0x4, offset = 0x4, fixed_abs, tag = 'smem constant byte address 0x4 - core index']
  #allocation1 [shape = 'u32[144,128]{1,0:T(1,128)}', space=vmem, size = 0x12000, scoped, tag = 'internal scratch']
  %s0 = inlined_call_operand.vmem [shape: bf16[8,128], index: 0, kind: input, shape index: {}]
  %s1 = inlined_call_operand.vmem [shape: bf16[128,128], index: 1, kind: input, shape index: {}]
  %s2 = inlined_call_operand.vmem [shape: f32[1,128], index: 2, kind: input, shape index: {}]
  %s3 = inlined_call_operand.vmem [shape: bf16[128,128], index: 3, kind: input, shape index: {}]
  %s4 = inlined_call_operand.vmem [shape: f32[1,128], index: 4, kind: input, shape index: {}]
  %s5 = inlined_call_operand.vmem [shape: bf16[128,128], index: 5, kind: input, shape index: {}]
  %s6 = inlined_call_operand.vmem [shape: f32[1,128], index: 6, kind: input, shape index: {}]
  %s7 = inlined_call_operand.hbm [shape: f32[8,128], index: 7, kind: output, shape index: {}]
  %s8 = sld [smem:[#allocation0]]
  $region38: #{net_forward.1} parent=0
    _
  %s10 = ssub.s32 1, %s8
  %s11 = scalar_select 0, %s10, %s8
  $region1: #{net_forward.1} parent=0
    #allocation2 [shape = 'u8[4096]{0}', space=vmem, size = 0x1000, scoped, tag = 'output window, operand 0, single buffered']
    #allocation3 [shape = 's32[1]{0}', space=sflag, size = 0x4, scoped, tag = 'scoped memory for net_forward.1']
    %12 = vsyncpa [#allocation3], 0
    // Predicated region
    $region2: #{net_forward.1} parent=1 // pred_check
      _
    $region3: #{net_forward.1} parent=1 // pred_check_branch
      %14 = sbr.rel (0) target = $region5
    $region4: #{net_forward.1} parent=1 // pred_region
      _
    $region5: #{net_forward.1} parent=1 // pred_fallthru
      _
    // Predicated region
    $region6: #{net_forward.1} parent=1 // pred_check
      _
    $region7: #{net_forward.1} parent=1 // pred_check_branch
      %16 = sbr.rel (0) target = $region9
    $region8: #{net_forward.1} parent=1 // pred_region
      _
    $region9: #{net_forward.1} parent=1 // pred_fallthru
      _
    // Predicated region
    $region10: #{net_forward.1} parent=1 // pred_check
      _
    $region11: #{net_forward.1} parent=1 // pred_check_branch
      %18 = sbr.rel (0) target = $region13
    $region12: #{net_forward.1} parent=1 // pred_region
      _
    $region13: #{net_forward.1} parent=1 // pred_fallthru
      _
    // Predicated region
    $region14: #{net_forward.1} parent=1 // pred_check
      _
    $region15: #{net_forward.1} parent=1 // pred_check_branch
      %20 = sbr.rel (0) target = $region17
    $region16: #{net_forward.1} parent=1 // pred_region
      _
    $region17: #{net_forward.1} parent=1 // pred_fallthru
      _
    // Predicated region
    $region18: #{net_forward.1} parent=1 // pred_check
      _
    $region19: #{net_forward.1} parent=1 // pred_check_branch
      %22 = sbr.rel (0) target = $region21
    $region20: #{net_forward.1} parent=1 // pred_region
      _
    $region21: #{net_forward.1} parent=1 // pred_fallthru
      _
    // Predicated region
    $region22: #{net_forward.1} parent=1 // pred_check
      _
    $region23: #{net_forward.1} parent=1 // pred_check_branch
      %24 = sbr.rel (0) target = $region25
    $region24: #{net_forward.1} parent=1 // pred_region
      _
    $region25: #{net_forward.1} parent=1 // pred_fallthru
      _
    // Predicated region
    $region26: #{net_forward.1} parent=1 // pred_check
      _
    $region27: #{net_forward.1} parent=1 // pred_check_branch
      %26 = sbr.rel (0) target = $region29
    $region28: #{net_forward.1} parent=1 // pred_region
      _
    $region29: #{net_forward.1} parent=1 // pred_fallthru
      _
    %v28 = vld [vmem:[%s0] sm:$0xf]
    %v29 = vld [vmem:[%s1] sm:$0xf]
    %v30 = vld [vmem:[%s1 + $0x4] sm:$0xf]
    %v31 = vld [vmem:[%s1 + $0x8] sm:$0xf]
    %v32 = vld [vmem:[%s1 + $0xc] sm:$0xf]
    %v33 = vld [vmem:[%s1 + $0x10] sm:$0xf]
    %v34 = vld [vmem:[%s1 + $0x14] sm:$0xf]
    %v35 = vld [vmem:[%s1 + $0x18] sm:$0xf]
    %v36 = vld [vmem:[%s1 + $0x1c] sm:$0xf]
    %v37 = vld [vmem:[%s1 + $0x20] sm:$0xf]
    %v38 = vld [vmem:[%s1 + $0x24] sm:$0xf]
    %v39 = vld [vmem:[%s1 + $0x28] sm:$0xf]
    %v40 = vld [vmem:[%s1 + $0x2c] sm:$0xf]
    %v41 = vld [vmem:[%s1 + $0x30] sm:$0xf]
    %v42 = vld [vmem:[%s1 + $0x34] sm:$0xf]
    %v43 = vld [vmem:[%s1 + $0x38] sm:$0xf]
    %v44 = vld [vmem:[%s1 + $0x3c] sm:$0xf]
    %v45 = vld [vmem:[%s2] sm:$0x1]
    %v47 = vlaneseq
    %v48 = vshrl.u32 %v47, 7
    %v49 = vsub.s32 0, %v48
    %v50 = vrot.slane %v45, %v49
    %v68 = vunpack.c.l.b16 %v29
    %v69 = vunpack.c.l.b16 %v30
    %v70 = vunpack.c.l.b16 %v31
    %v71 = vunpack.c.l.b16 %v32
    %v72 = vunpack.c.l.b16 %v33
    %v73 = vunpack.c.l.b16 %v34
    %v74 = vunpack.c.l.b16 %v35
    %v75 = vunpack.c.l.b16 %v36
    %v76 = vunpack.c.l.b16 %v37
    %v77 = vunpack.c.l.b16 %v38
    %v78 = vunpack.c.l.b16 %v39
    %v79 = vunpack.c.l.b16 %v40
    %v80 = vunpack.c.l.b16 %v41
    %v81 = vunpack.c.l.b16 %v42
    %v82 = vunpack.c.l.b16 %v43
    %v83 = vunpack.c.l.b16 %v44
    %v84 = vpack.c.b16 %v69, %v68
    %v85 = vpack.c.b16 %v71, %v70
    %v86 = vpack.c.b16 %v73, %v72
    %v87 = vpack.c.b16 %v75, %v74
    %v88 = vpack.c.b16 %v77, %v76
    %v89 = vpack.c.b16 %v79, %v78
    %v90 = vpack.c.b16 %v81, %v80
    %v91 = vpack.c.b16 %v83, %v82
    %100 = vmatprep.subr.bf16.mxu0 0
    %101 = vmatpush1.bf16.msra.mxu0 %v84
    %102 = vmatprep.subr.bf16.mxu0 0
    %103 = vmatpush1.bf16.msra.mxu0 %v85
    %104 = vmatprep.subr.bf16.mxu0 0
    %105 = vmatpush1.bf16.msra.mxu0 %v86
    %106 = vmatprep.subr.bf16.mxu0 0
    %107 = vmatpush1.bf16.msra.mxu0 %v87
    %108 = vmatprep.subr.bf16.mxu0 0
    %109 = vmatpush1.bf16.msra.mxu0 %v88
    %110 = vmatprep.subr.bf16.mxu0 0
    %111 = vmatpush1.bf16.msra.mxu0 %v89
    %112 = vmatprep.subr.bf16.mxu0 0
    %113 = vmatpush1.bf16.msra.mxu0 %v90
    %114 = vmatprep.subr.bf16.mxu0 0
    %115 = vmatpush1.bf16.msra.mxu0 %v91
    %116 = vmatprep.subr.bf16.mxu0 0
    %117 = vmatpush1.bf16.msra.mxu0 0
    %118 = vmatprep.subr.bf16.mxu0 0
    %119 = vmatpush1.bf16.msra.mxu0 0
    %120 = vmatprep.subr.bf16.mxu0 0
    %121 = vmatpush1.bf16.msra.mxu0 0
    %122 = vmatprep.subr.bf16.mxu0 0
    %123 = vmatpush1.bf16.msra.mxu0 0
    %124 = vmatprep.subr.bf16.mxu0 0
    %125 = vmatpush1.bf16.msra.mxu0 0
    %126 = vmatprep.subr.bf16.mxu0 0
    %127 = vmatpush1.bf16.msra.mxu0 0
    %128 = vmatprep.subr.bf16.mxu0 0
    %129 = vmatpush1.bf16.msra.mxu0 0
    %130 = vmatprep.subr.bf16.mxu0 0
    %131 = vmatpush1.bf16.msra.mxu0 0
    %132 = vmatprep.mubr.bf16.mxu0 0
    %133 = vmatmul.mubr.bf16.gmra.mrb[0].mxu0 %v28
    %v134 = vpop.f32.mrb[0].mxu0
    %v135 = vadd.f32 %v50, %v134
    %v136 = vpop.f32.mrb[0].mxu0
    %v137 = vpop.f32.mrb[0].mxu0
    %v138 = vpop.f32.mrb[0].mxu0
    %139 = vdwg.mxu0
    %v140 = vmax.f32 %v135, 0.0
    %v141 = vpack.c.bf16 %v140, %v140
    %v142 = vld [vmem:[%s3] sm:$0xf]
    %v143 = vld [vmem:[%s3 + $0x4] sm:$0xf]
    %v144 = vld [vmem:[%s3 + $0x8] sm:$0xf]
    %v145 = vld [vmem:[%s3 + $0xc] sm:$0xf]
    %v146 = vld [vmem:[%s3 + $0x10] sm:$0xf]
    %v147 = vld [vmem:[%s3 + $0x14] sm:$0xf]
    %v148 = vld [vmem:[%s3 + $0x18] sm:$0xf]
    %v149 = vld [vmem:[%s3 + $0x1c] sm:$0xf]
    %v150 = vld [vmem:[%s3 + $0x20] sm:$0xf]
    %v151 = vld [vmem:[%s3 + $0x24] sm:$0xf]
    %v152 = vld [vmem:[%s3 + $0x28] sm:$0xf]
    %v153 = vld [vmem:[%s3 + $0x2c] sm:$0xf]
    %v154 = vld [vmem:[%s3 + $0x30] sm:$0xf]
    %v155 = vld [vmem:[%s3 + $0x34] sm:$0xf]
    %v156 = vld [vmem:[%s3 + $0x38] sm:$0xf]
    %v157 = vld [vmem:[%s3 + $0x3c] sm:$0xf]
    %v158 = vld [vmem:[%s4] sm:$0x1]
    %v160 = vlaneseq
    %v161 = vshrl.u32 %v160, 7
    %v162 = vsub.s32 0, %v161
    %v163 = vrot.slane %v158, %v162
    %v181 = vunpack.c.l.b16 %v142
    %v182 = vunpack.c.l.b16 %v143
    %v183 = vunpack.c.l.b16 %v144
    %v184 = vunpack.c.l.b16 %v145
    %v185 = vunpack.c.l.b16 %v146
    %v186 = vunpack.c.l.b16 %v147
    %v187 = vunpack.c.l.b16 %v148
    %v188 = vunpack.c.l.b16 %v149
    %v189 = vunpack.c.l.b16 %v150
    %v190 = vunpack.c.l.b16 %v151
    %v191 = vunpack.c.l.b16 %v152
    %v192 = vunpack.c.l.b16 %v153
    %v193 = vunpack.c.l.b16 %v154
    %v194 = vunpack.c.l.b16 %v155
    %v195 = vunpack.c.l.b16 %v156
    %v196 = vunpack.c.l.b16 %v157
    %v197 = vpack.c.b16 %v182, %v181
    %v198 = vpack.c.b16 %v184, %v183
    %v199 = vpack.c.b16 %v186, %v185
    %v200 = vpack.c.b16 %v188, %v187
    %v201 = vpack.c.b16 %v190, %v189
    %v202 = vpack.c.b16 %v192, %v191
    %v203 = vpack.c.b16 %v194, %v193
    %v204 = vpack.c.b16 %v196, %v195
    %213 = vmatprep.subr.bf16.mxu0 0
    %214 = vmatpush1.bf16.msra.mxu0 %v197
    %215 = vmatprep.subr.bf16.mxu0 0
    %216 = vmatpush1.bf16.msra.mxu0 %v198
    %217 = vmatprep.subr.bf16.mxu0 0
    %218 = vmatpush1.bf16.msra.mxu0 %v199
    %219 = vmatprep.subr.bf16.mxu0 0
    %220 = vmatpush1.bf16.msra.mxu0 %v200
    %221 = vmatprep.subr.bf16.mxu0 0
    %222 = vmatpush1.bf16.msra.mxu0 %v201
    %223 = vmatprep.subr.bf16.mxu0 0
    %224 = vmatpush1.bf16.msra.mxu0 %v202
    %225 = vmatprep.subr.bf16.mxu0 0
    %226 = vmatpush1.bf16.msra.mxu0 %v203
    %227 = vmatprep.subr.bf16.mxu0 0
    %228 = vmatpush1.bf16.msra.mxu0 %v204
    %229 = vmatprep.subr.bf16.mxu0 0
    %230 = vmatpush1.bf16.msra.mxu0 0
    %231 = vmatprep.subr.bf16.mxu0 0
    %232 = vmatpush1.bf16.msra.mxu0 0
    %233 = vmatprep.subr.bf16.mxu0 0
    %234 = vmatpush1.bf16.msra.mxu0 0
    %235 = vmatprep.subr.bf16.mxu0 0
    %236 = vmatpush1.bf16.msra.mxu0 0
    %237 = vmatprep.subr.bf16.mxu0 0
    %238 = vmatpush1.bf16.msra.mxu0 0
    %239 = vmatprep.subr.bf16.mxu0 0
    %240 = vmatpush1.bf16.msra.mxu0 0
    %241 = vmatprep.subr.bf16.mxu0 0
    %242 = vmatpush1.bf16.msra.mxu0 0
    %243 = vmatprep.subr.bf16.mxu0 0
    %244 = vmatpush1.bf16.msra.mxu0 0
    %245 = vmatprep.mubr.bf16.mxu0 0
    %246 = vmatmul.mubr.bf16.gmra.mrb[0].mxu0 %v141
    %v247 = vpop.f32.mrb[0].mxu0
    %v248 = vadd.f32 %v163, %v247
    %v249 = vpop.f32.mrb[0].mxu0
    %v250 = vpop.f32.mrb[0].mxu0
    %v251 = vpop.f32.mrb[0].mxu0
    %252 = vdwg.mxu0
    %v253 = vmax.f32 %v248, 0.0
    %v254 = vpack.c.bf16 %v253, %v253
    %v255 = vld [vmem:[%s5] sm:$0xf]
    %v256 = vld [vmem:[%s5 + $0x4] sm:$0xf]
    %v257 = vld [vmem:[%s5 + $0x8] sm:$0xf]
    %v258 = vld [vmem:[%s5 + $0xc] sm:$0xf]
    %v259 = vld [vmem:[%s5 + $0x10] sm:$0xf]
    %v260 = vld [vmem:[%s5 + $0x14] sm:$0xf]
    %v261 = vld [vmem:[%s5 + $0x18] sm:$0xf]
    %v262 = vld [vmem:[%s5 + $0x1c] sm:$0xf]
    %v263 = vld [vmem:[%s5 + $0x20] sm:$0xf]
    %v264 = vld [vmem:[%s5 + $0x24] sm:$0xf]
    %v265 = vld [vmem:[%s5 + $0x28] sm:$0xf]
    %v266 = vld [vmem:[%s5 + $0x2c] sm:$0xf]
    %v267 = vld [vmem:[%s5 + $0x30] sm:$0xf]
    %v268 = vld [vmem:[%s5 + $0x34] sm:$0xf]
    %v269 = vld [vmem:[%s5 + $0x38] sm:$0xf]
    %v270 = vld [vmem:[%s5 + $0x3c] sm:$0xf]
    %v271 = vld [vmem:[%s6] sm:$0x1]
    %v273 = vlaneseq
    %v274 = vshrl.u32 %v273, 7
    %v275 = vsub.s32 0, %v274
    %v276 = vrot.slane %v271, %v275
    %v294 = vunpack.c.l.b16 %v255
    %v295 = vunpack.c.l.b16 %v256
    %v296 = vunpack.c.l.b16 %v257
    %v297 = vunpack.c.l.b16 %v258
    %v298 = vunpack.c.l.b16 %v259
    %v299 = vunpack.c.l.b16 %v260
    %v300 = vunpack.c.l.b16 %v261
    %v301 = vunpack.c.l.b16 %v262
    %v302 = vunpack.c.l.b16 %v263
    %v303 = vunpack.c.l.b16 %v264
    %v304 = vunpack.c.l.b16 %v265
    %v305 = vunpack.c.l.b16 %v266
    %v306 = vunpack.c.l.b16 %v267
    %v307 = vunpack.c.l.b16 %v268
    %v308 = vunpack.c.l.b16 %v269
    %v309 = vunpack.c.l.b16 %v270
    %v310 = vpack.c.b16 %v295, %v294
    %v311 = vpack.c.b16 %v297, %v296
    %v312 = vpack.c.b16 %v299, %v298
    %v313 = vpack.c.b16 %v301, %v300
    %v314 = vpack.c.b16 %v303, %v302
    %v315 = vpack.c.b16 %v305, %v304
    %v316 = vpack.c.b16 %v307, %v306
    %v317 = vpack.c.b16 %v309, %v308
    %326 = vmatprep.subr.bf16.mxu0 0
    %327 = vmatpush1.bf16.msra.mxu0 %v310
    %328 = vmatprep.subr.bf16.mxu0 0
    %329 = vmatpush1.bf16.msra.mxu0 %v311
    %330 = vmatprep.subr.bf16.mxu0 0
    %331 = vmatpush1.bf16.msra.mxu0 %v312
    %332 = vmatprep.subr.bf16.mxu0 0
    %333 = vmatpush1.bf16.msra.mxu0 %v313
    %334 = vmatprep.subr.bf16.mxu0 0
    %335 = vmatpush1.bf16.msra.mxu0 %v314
    %336 = vmatprep.subr.bf16.mxu0 0
    %337 = vmatpush1.bf16.msra.mxu0 %v315
    %338 = vmatprep.subr.bf16.mxu0 0
    %339 = vmatpush1.bf16.msra.mxu0 %v316
    %340 = vmatprep.subr.bf16.mxu0 0
    %341 = vmatpush1.bf16.msra.mxu0 %v317
    %342 = vmatprep.subr.bf16.mxu0 0
    %343 = vmatpush1.bf16.msra.mxu0 0
    %344 = vmatprep.subr.bf16.mxu0 0
    %345 = vmatpush1.bf16.msra.mxu0 0
    %346 = vmatprep.subr.bf16.mxu0 0
    %347 = vmatpush1.bf16.msra.mxu0 0
    %348 = vmatprep.subr.bf16.mxu0 0
    %349 = vmatpush1.bf16.msra.mxu0 0
    %350 = vmatprep.subr.bf16.mxu0 0
    %351 = vmatpush1.bf16.msra.mxu0 0
    %352 = vmatprep.subr.bf16.mxu0 0
    %353 = vmatpush1.bf16.msra.mxu0 0
    %354 = vmatprep.subr.bf16.mxu0 0
    %355 = vmatpush1.bf16.msra.mxu0 0
    %356 = vmatprep.subr.bf16.mxu0 0
    %357 = vmatpush1.bf16.msra.mxu0 0
    %358 = vmatprep.mubr.bf16.mxu0 0
    %359 = vmatmul.mubr.bf16.gmra.mrb[0].mxu0 %v254
    %v360 = vpop.f32.mrb[0].mxu0
    %v361 = vadd.f32 %v276, %v360
    %v362 = vpop.f32.mrb[0].mxu0
    %v363 = vpop.f32.mrb[0].mxu0
    %v364 = vpop.f32.mrb[0].mxu0
    %365 = vdwg.mxu0
    %366 = vmax.xlane.f32.xlu0 %v361
    %v367 = vpop.xlane.xlu0 %366
    %v368 = vsub.f32 %v361, %v367
    %v369 = vmul.f32 %v368, 1.442695
    %v370 = vpow.pop %v369
    %371 = vadd.xlane.f32.xlu0 %v370
    %v372 = vpop.xlane.xlu0 %371
    %v373 = vlog2.pop %v372
    %v374 = vmul.f32 %v373, 0.6931472
    %v375 = vsub.f32 %v368, %v374
    %376 = vst [vmem:[#allocation2] sm:$0xff] %v375
    // Predicated region
    $region30: #{net_forward.1} parent=1 // pred_check
      _
    $region31: #{net_forward.1} parent=1 // pred_check_branch
      %378 = sbr.rel (0) target = $region33
    $region32: #{net_forward.1} parent=1 // pred_region
      %s380 = ssub.s32 128, 128
      %381 = vsyncadd [#allocation3], %s380
      %s383 = sshll.u32 [#allocation2], 4
      %s384 = int_to_ptr.vmem [resolvable:$true] %s383
      %386 = dma.vmem_to_hbm [thread:$0]  %s384, 128, %s7, [#allocation3]
    $region33: #{net_forward.1} parent=1 // pred_fallthru
      _
    // Predicated region
    $region34: #{net_forward.1} parent=1 // pred_check
      _
    $region35: #{net_forward.1} parent=1 // pred_check_branch
      %388 = sbr.rel (0) target = $region37
    $region36: #{net_forward.1} parent=1 // pred_region
      %389 = dma.done [#allocation3], 128
    $region37: #{net_forward.1} parent=1 // pred_fallthru
      _
    %390 = vsyncpa [#allocation3], 1

</llo_original>
